<compile_context>
chip_gen: v5e
topology: v5e:2x2
jax: 0.10.0
libtpu: 0.0.40
codegen_flags: <defaults>
</compile_context>

<pallas_src>
import jax
import jax.numpy as jnp
from jax.experimental import pallas as pl
from jax.experimental.pallas import tpu as pltpu


def _sigmoid_eup(z):
    # exp -> EUP, approximate reciprocal -> EUP (vrcp); keeps the VALU slots free.
    return pl.reciprocal(1.0 + jnp.exp(-z), approx=True)


def _nn_2_2_1_kernel(p_ref, x_ref, out_ref):
    # p_ref: (9,) f32 in SMEM:
    #   [0..3] = W1^T row-major (in, out):  w00 w01 w10 w11
    #   [4..5] = b1
    #   [6..7] = W2^T (in, 1):              w2_0 w2_1
    #   [8]    = b2
    # x_ref: (2, TB) f32 in VMEM (features on sublanes, batch on lanes).
    # out_ref: (1, TB) f32.
    x = x_ref[...]                     # (2, TB)
    x0 = x[0:1, :]                     # (1, TB)  feature 0
    x1 = x[1:2, :]                     # (1, TB)  feature 1

    w1_00 = p_ref[0]
    w1_01 = p_ref[1]
    w1_10 = p_ref[2]
    w1_11 = p_ref[3]
    b1_0 = p_ref[4]
    b1_1 = p_ref[5]
    w2_0 = p_ref[6]
    w2_1 = p_ref[7]
    b2_0 = p_ref[8]

    # Hidden layer: z1[j] = sum_i x[i] * W1^T[i, j] + b1[j]   (pure VPU broadcast math)
    z1_0 = x0 * w1_00 + x1 * w1_10 + b1_0
    z1_1 = x0 * w1_01 + x1 * w1_11 + b1_1
    h0 = _sigmoid_eup(z1_0)
    h1 = _sigmoid_eup(z1_1)

    # Output layer: z2 = h0 * W2^T[0,0] + h1 * W2^T[1,0] + b2
    z2 = h0 * w2_0 + h1 * w2_1 + b2_0
    out_ref[...] = _sigmoid_eup(z2)    # (1, TB)


def nn_2_2_1_forward(x, w1_t, b1, w2_t, b2, *, block_b=512):
    """x: (B, 2) f32; w1_t: (2, 2) (in,out); b1: (2,); w2_t: (2, 1); b2: (1,). -> (B, 1)."""
    B = x.shape[0]
    n_tiles = pl.cdiv(B, block_b)
    Bp = n_tiles * block_b

    # Layout plumbing in the wrapper: transpose so batch is the lane dim, pad to a
    # multiple of the lane tile (zeros are safe: sigmoid(anything finite) is finite,
    # and padded columns are sliced away below).
    x_t = jnp.transpose(x.astype(jnp.float32))          # (2, B)
    if Bp != B:
        x_t = jnp.pad(x_t, ((0, 0), (0, Bp - B)))       # (2, Bp)

    params = jnp.concatenate(
        [w1_t.reshape(-1), b1.reshape(-1), w2_t.reshape(-1), b2.reshape(-1)]
    ).astype(jnp.float32)                                # (9,)

    out_t = pl.pallas_call(
        _nn_2_2_1_kernel,
        out_shape=jax.ShapeDtypeStruct((1, Bp), jnp.float32),
        grid=(n_tiles,),
        in_specs=[
            pl.BlockSpec(memory_space=pltpu.MemorySpace.SMEM),        # params, whole array
            pl.BlockSpec((2, block_b), lambda i: (0, i)),             # x tile, lane-dense
        ],
        out_specs=pl.BlockSpec((1, block_b), lambda i: (0, i)),       # out tile, lane-dense
        compiler_params=pltpu.CompilerParams(
            dimension_semantics=("parallel",),
        ),
    )(params, x_t)                                       # (1, Bp)

    return jnp.transpose(out_t[:, :B])                   # (B, 1)


def reference_forward(x, w1_t, b1, w2_t, b2):
    h = jax.nn.sigmoid(x @ w1_t + b1.reshape(1, -1))
    return jax.nn.sigmoid(h @ w2_t + b2.reshape(1, -1))


if __name__ == "__main__":
    key = jax.random.PRNGKey(0)
    kx, k1, k2, k3, k4 = jax.random.split(key, 5)

    # XOR-style training split size from the original script (0.8 * 1000).
    B = 800
    x = jax.random.uniform(kx, (B, 2), dtype=jnp.float32)

    # PyTorch parameter shapes: hidden.weight (2,2), hidden.bias (2,),
    # output.weight (1,2), output.bias (1,).  Stored pre-transposed as (in, out).
    w1 = jax.random.normal(k1, (2, 2), dtype=jnp.float32) * 0.5   # hidden.weight
    b1 = jax.random.normal(k2, (2,), dtype=jnp.float32) * 0.5     # hidden.bias
    w2 = jax.random.normal(k3, (1, 2), dtype=jnp.float32) * 0.5   # output.weight
    b2 = jax.random.normal(k4, (1,), dtype=jnp.float32) * 0.5     # output.bias

    w1_t = w1.T                      # (2, 2)  in x out
    w2_t = w2.T                      # (2, 1)

    y = nn_2_2_1_forward(x, w1_t, b1, w2_t, b2)
    y = jax.block_until_ready(y)

    y_ref = reference_forward(x, w1_t, b1, w2_t, b2)
    assert y.shape == (B, 1)
    # approx=True reciprocal trades ~1e-4 relative accuracy for EUP throughput.
    assert jnp.allclose(y, y_ref, atol=5e-3, rtol=5e-3), float(jnp.max(jnp.abs(y - y_ref)))

    print("KERNEL_OK")
</pallas_src>

<mosaic_0001>
module attributes {stable_mosaic.version = 11 : i64} {
  func.func @_nn_2_2_1_kernel(%arg0: i32, %arg1: memref<9xf32, #tpu.memory_space<smem>>, %arg2: memref<2x512xf32, #tpu.memory_space<vmem>>, %arg3: memref<1x512xf32, #tpu.memory_space<vmem>>) attributes {dimension_semantics = [#tpu.dimension_semantics<parallel>], iteration_bounds = array<i64: 2>, scalar_prefetch = 0 : i64, scratch_operands = 0 : i64, tpu.core_type = #tpu.core_type<tc>, window_params = [{transform_indices = @transform_0, window_bounds = array<i64: 9>}, {transform_indices = @transform_1, window_bounds = array<i64: 2, 512>}, {transform_indices = @transform_2, window_bounds = array<i64: 1, 512>}]} {
    %c0 = arith.constant 0 : index
    %c0_0 = arith.constant 0 : index
    %0 = vector.load %arg2[%c0, %c0_0] : memref<2x512xf32, #tpu.memory_space<vmem>>, vector<2x512xf32>
    %1 = vector.extract_strided_slice %0 {offsets = [0, 0], sizes = [1, 512], strides = [1, 1]} : vector<2x512xf32> to vector<1x512xf32>
    %2 = vector.extract_strided_slice %0 {offsets = [1, 0], sizes = [1, 512], strides = [1, 1]} : vector<2x512xf32> to vector<1x512xf32>
    %c0_1 = arith.constant 0 : index
    %3 = memref.load %arg1[%c0_1] : memref<9xf32, #tpu.memory_space<smem>>
    %c1 = arith.constant 1 : index
    %4 = memref.load %arg1[%c1] : memref<9xf32, #tpu.memory_space<smem>>
    %c2 = arith.constant 2 : index
    %5 = memref.load %arg1[%c2] : memref<9xf32, #tpu.memory_space<smem>>
    %c3 = arith.constant 3 : index
    %6 = memref.load %arg1[%c3] : memref<9xf32, #tpu.memory_space<smem>>
    %c4 = arith.constant 4 : index
    %7 = memref.load %arg1[%c4] : memref<9xf32, #tpu.memory_space<smem>>
    %c5 = arith.constant 5 : index
    %8 = memref.load %arg1[%c5] : memref<9xf32, #tpu.memory_space<smem>>
    %c6 = arith.constant 6 : index
    %9 = memref.load %arg1[%c6] : memref<9xf32, #tpu.memory_space<smem>>
    %c7 = arith.constant 7 : index
    %10 = memref.load %arg1[%c7] : memref<9xf32, #tpu.memory_space<smem>>
    %c8 = arith.constant 8 : index
    %11 = memref.load %arg1[%c8] : memref<9xf32, #tpu.memory_space<smem>>
    %12 = vector.broadcast %3 : f32 to vector<1x512xf32>
    %13 = arith.mulf %1, %12 : vector<1x512xf32>
    %14 = vector.broadcast %5 : f32 to vector<1x512xf32>
    %15 = arith.mulf %2, %14 : vector<1x512xf32>
    %16 = arith.addf %13, %15 : vector<1x512xf32>
    %17 = vector.broadcast %7 : f32 to vector<1x512xf32>
    %18 = arith.addf %16, %17 : vector<1x512xf32>
    %19 = vector.broadcast %4 : f32 to vector<1x512xf32>
    %20 = arith.mulf %1, %19 : vector<1x512xf32>
    %21 = vector.broadcast %6 : f32 to vector<1x512xf32>
    %22 = arith.mulf %2, %21 : vector<1x512xf32>
    %23 = arith.addf %20, %22 : vector<1x512xf32>
    %24 = vector.broadcast %8 : f32 to vector<1x512xf32>
    %25 = arith.addf %23, %24 : vector<1x512xf32>
    %cst = arith.constant 0.000000e+00 : f32
    %26 = vector.broadcast %cst : f32 to vector<1x512xf32>
    %27 = arith.subf %26, %18 : vector<1x512xf32>
    %28 = math.exp %27 : vector<1x512xf32>
    %cst_2 = arith.constant 1.000000e+00 : f32
    %29 = vector.broadcast %cst_2 : f32 to vector<1x512xf32>
    %30 = arith.addf %29, %28 : vector<1x512xf32>
    %31 = tpu.reciprocal %30 {approx = true} : vector<1x512xf32> -> vector<1x512xf32>
    %cst_3 = arith.constant 0.000000e+00 : f32
    %32 = vector.broadcast %cst_3 : f32 to vector<1x512xf32>
    %33 = arith.subf %32, %25 : vector<1x512xf32>
    %34 = math.exp %33 : vector<1x512xf32>
    %cst_4 = arith.constant 1.000000e+00 : f32
    %35 = vector.broadcast %cst_4 : f32 to vector<1x512xf32>
    %36 = arith.addf %35, %34 : vector<1x512xf32>
    %37 = tpu.reciprocal %36 {approx = true} : vector<1x512xf32> -> vector<1x512xf32>
    %38 = vector.broadcast %9 : f32 to vector<1x512xf32>
    %39 = arith.mulf %31, %38 : vector<1x512xf32>
    %40 = vector.broadcast %10 : f32 to vector<1x512xf32>
    %41 = arith.mulf %37, %40 : vector<1x512xf32>
    %42 = arith.addf %39, %41 : vector<1x512xf32>
    %43 = vector.broadcast %11 : f32 to vector<1x512xf32>
    %44 = arith.addf %42, %43 : vector<1x512xf32>
    %cst_5 = arith.constant 0.000000e+00 : f32
    %45 = vector.broadcast %cst_5 : f32 to vector<1x512xf32>
    %46 = arith.subf %45, %44 : vector<1x512xf32>
    %47 = math.exp %46 : vector<1x512xf32>
    %cst_6 = arith.constant 1.000000e+00 : f32
    %48 = vector.broadcast %cst_6 : f32 to vector<1x512xf32>
    %49 = arith.addf %48, %47 : vector<1x512xf32>
    %50 = tpu.reciprocal %49 {approx = true} : vector<1x512xf32> -> vector<1x512xf32>
    %c0_7 = arith.constant 0 : index
    %c0_8 = arith.constant 0 : index
    %51 = vector.load %arg3[%c0_7, %c0_8] : memref<1x512xf32, #tpu.memory_space<vmem>>, vector<1x512xf32>
    tpu.vector_store %arg3[%c0_7, %c0_8], %50 {strides = array<i32>} : memref<1x512xf32, #tpu.memory_space<vmem>>, vector<1x512xf32>,
    return
  }
  func.func @transform_0(%arg0: i32) -> i32 {
    %c0_i32 = arith.constant 0 : i32
    %c0_i32_0 = arith.constant 0 : i32
    return %c0_i32 : i32
  }
  func.func @transform_1(%arg0: i32) -> (i32, i32) {
    %c0_i32 = arith.constant 0 : i32
    %c0_i32_0 = arith.constant 0 : i32
    return %c0_i32, %arg0 : i32, i32
  }
  func.func @transform_2(%arg0: i32) -> (i32, i32) {
    %c0_i32 = arith.constant 0 : i32
    %c0_i32_0 = arith.constant 0 : i32
    return %c0_i32, %arg0 : i32, i32
  }
}

</mosaic_0001>

<llo_original>
// kernel: tpu_custom_call.1
$region0: #{tpu_custom_call.1}
  #allocation0 [shape = 'u32[]', space=smem, size = 0x4, offset = 0x4, fixed_abs, tag = 'smem constant byte address 0x4 - core index']
  #allocation1 [shape = 'u32[72,128]{1,0:T(1,128)}', space=vmem, size = 0x9000, scoped, tag = 'internal scratch']
  %s0 = inlined_call_operand.hbm [shape: f32[9], index: 0, kind: input, shape index: {}]
  %s1 = inlined_call_operand.hbm [shape: f32[2,1024], index: 1, kind: input, shape index: {}]
  %s2 = inlined_call_operand.hbm [shape: f32[1,1024], index: 2, kind: output, shape index: {}]
  %s3 = sld [smem:[#allocation0]]
  $region49: #{tpu_custom_call.1} parent=0
    _
  %s5 = ssub.s32 1, %s3
  %s6 = scalar_select 0, %s5, %s3
  $region1: #{tpu_custom_call.1} parent=0
    #allocation2 [shape = 'u8[512]{0}', space=smem, size = 0x200, scoped, tag = 'input window, operand 0, single buffered']
    #allocation3 [shape = 's32[2]{0}', space=sflag, size = 0x8, scoped, tag = 'scoped memory for tpu_custom_call.1']
    #allocation4 [shape = 's32[2]{0}', space=sflag, size = 0x8, scoped, tag = 'scoped memory for tpu_custom_call.1']
    #allocation5 [shape = 's32[2]{0}', space=sflag, size = 0x8, scoped, tag = 'scoped memory for tpu_custom_call.1']
    #allocation6 [shape = 'u8[8192]{0}', space=vmem, size = 0x2000, scoped, tag = 'input window, operand 1']
    #allocation7 [shape = 'u8[4096]{0}', space=vmem, size = 0x1000, scoped, tag = 'output window, operand 0']
    %7 = vsyncpa [#allocation5], 0
    %8 = vsyncpa [#allocation3], 0
    %s9 = scalar_lea.sflag [#allocation3], 1
    %10 = vsyncpa %s9, 0
    %11 = vsyncpa [#allocation4], 0
    %s12 = scalar_lea.sflag [#allocation4], 1
    %13 = vsyncpa %s12, 0
    loop: start=0, step=1, limit=4
    $region2: #{tpu_custom_call.1} parent=1 // loop_pre_header
      _
    $region3: #{tpu_custom_call.1} parent=1 // loop_header
      %s15 = sphi 0, %s19
      %p16 = scmp.ge.s32.totalorder %s15, 4
      %s23 = sphi 0, %s23
      %s25 = sphi 0, %s23
      %s26 = sphi 0, %s25
      %s40 = sphi 0, %s26
      %s46 = sphi 0, %s48
      %s49 = sphi 0, %s46
      %s50 = sphi 0, %s49
      %s66 = sphi 0, %s50
      %s72 = sphi 0, %s74
      %s75 = sphi 0, %s72
      %s76 = sphi 0, %s75
      %s92 = sphi 0, %s76
    $region4: #{tpu_custom_call.1} parent=1 // loop_header_branch
      %18 = sbr.rel (%p16) target = $region8
    $region5: #{tpu_custom_call.1} parent=1 // loop_body
      %s20 = ssub.s32 %s15, 1
      %s21 = ssub.s32 %s15, 2
      %s22 = sadd.s32 %s15, 1
      %s24 = sadd.s32 %s23, 1
      %p27 = scmp.eq.s32.totalorder %s15, 1
      %p28 = scmp.ne.s32.totalorder %s23, %s25
      %p29 = scmp.eq.s32.totalorder %s15, 0
      %p30 = por %p28, %p29
      %p31 = scmp.ne.s32.totalorder %s23, %s25
      %p32 = scmp.eq.s32.totalorder %s20, 1
      %p33 = por %p31, %p32
      %p34 = scmp.ne.s32.totalorder %s25, %s26
      %p35 = scmp.eq.s32.totalorder %s20, 0
      %p36 = por %p34, %p35
      %p37 = scmp.ne.s32.totalorder %s25, %s26
      %p38 = scmp.eq.s32.totalorder %s21, 1
      %p39 = por %p37, %p38
      %p41 = scmp.ne.s32.totalorder %s26, %s40
      %p42 = scmp.eq.s32.totalorder %s21, 0
      %p43 = por %p41, %p42
      %s44 = ssub.s32 %s15, %s22
      %p45 = scmp.eq.s32.totalorder %s44, 0
      %s47 = sadd.s32 %s46, 1
      %s48 = scalar_select %p45, %s46, %s47
      %p51 = pneg %p45
      %p52 = scmp.eq.s32.totalorder %s15, 1
      %p53 = por %p51, %p52
      %p54 = scmp.ne.s32.totalorder %s46, %s49
      %p55 = scmp.eq.s32.totalorder %s15, 0
      %p56 = por %p54, %p55
      %p57 = scmp.ne.s32.totalorder %s46, %s49
      %p58 = scmp.eq.s32.totalorder %s20, 1
      %p59 = por %p57, %p58
      %p60 = scmp.ne.s32.totalorder %s49, %s50
      %p61 = scmp.eq.s32.totalorder %s20, 0
      %p62 = por %p60, %p61
      %p63 = scmp.ne.s32.totalorder %s49, %s50
      %p64 = scmp.eq.s32.totalorder %s21, 1
      %p65 = por %p63, %p64
      %p67 = scmp.ne.s32.totalorder %s50, %s66
      %p68 = scmp.eq.s32.totalorder %s21, 0
      %p69 = por %p67, %p68
      %s70 = ssub.s32 %s15, %s22
      %p71 = scmp.eq.s32.totalorder %s70, 0
      %s73 = sadd.s32 %s72, 1
      %s74 = scalar_select %p71, %s72, %s73
      %p77 = pneg %p71
      %p78 = scmp.eq.s32.totalorder %s15, 1
      %p79 = por %p77, %p78
      %p80 = scmp.ne.s32.totalorder %s72, %s75
      %p81 = scmp.eq.s32.totalorder %s15, 0
      %p82 = por %p80, %p81
      %p83 = scmp.ne.s32.totalorder %s72, %s75
      %p84 = scmp.eq.s32.totalorder %s20, 1
      %p85 = por %p83, %p84
      %p86 = scmp.ne.s32.totalorder %s75, %s76
      %p87 = scmp.eq.s32.totalorder %s20, 0
      %p88 = por %p86, %p87
      %p89 = scmp.ne.s32.totalorder %s75, %s76
      %p90 = scmp.eq.s32.totalorder %s21, 1
      %p91 = por %p89, %p90
      %p93 = scmp.ne.s32.totalorder %s76, %s92
      %p94 = scmp.eq.s32.totalorder %s21, 0
      %p95 = por %p93, %p94
      %p96 = scmp.le.s32.totalorder 1, %s15
      %p97 = scmp.lt.s32.totalorder %s15, 3
      %p98 = pnand %p96, %p97
      %p99 = pneg %p98
      // Predicated region
      $region9: #{tpu_custom_call.1} parent=5 // pred_check
        _
      $region10: #{tpu_custom_call.1} parent=5 // pred_check_branch
        %101 = sbr.rel (%p98) target = $region12
      $region11: #{tpu_custom_call.1} parent=5 // pred_region
        %s102 = ssub.s32 %s15, 1
        // Predicated region
        $region13: #{tpu_custom_call.1} parent=11 // pred_check
          %p103 = pneg %p36
        $region14: #{tpu_custom_call.1} parent=11 // pred_check_branch
          %105 = sbr.rel (%p103) target = $region16
        $region15: #{tpu_custom_call.1} parent=11 // pred_region
          %107 = vsyncadd [#allocation5], 0
          %s109 = sshll.u32 %s0, 4
          %s110 = int_to_ptr.hbm [resolvable:$true] %s109
          %112 = dma.hbm_to_smem %s110, 16, [#allocation2], [#allocation5]
        $region16: #{tpu_custom_call.1} parent=11 // pred_fallthru
          _
      $region12: #{tpu_custom_call.1} parent=5 // pred_fallthru
        _
      %p113 = scmp.lt.s32.totalorder %s15, 2
      // Predicated region
      $region17: #{tpu_custom_call.1} parent=5 // pred_check
        %p114 = pneg %p113
      $region18: #{tpu_custom_call.1} parent=5 // pred_check_branch
        %116 = sbr.rel (%p114) target = $region20
      $region19: #{tpu_custom_call.1} parent=5 // pred_region
        // Predicated region
        $region21: #{tpu_custom_call.1} parent=19 // pred_check
          %p117 = pneg %p56
        $region22: #{tpu_custom_call.1} parent=19 // pred_check_branch
          %119 = sbr.rel (%p117) target = $region24
        $region23: #{tpu_custom_call.1} parent=19 // pred_region
          %s120 = sand.u32 %s46, 1
          %s121 = scalar_lea.sflag [#allocation3], %s120
          %s122 = sand.u32 %s46, 1
          %s123 = smul.addr %s122, 8
          %s124 = scalar_lea.vmem [#allocation6], %s123
          %s125 = smul.u32 4, %s15
          %127 = vsyncadd %s121, 0
          %s128 = smul.addr %s125, 2
          %s129 = scalar_lea.hbm %s1, %s128
          %s131 = sshll.u32 %s129, 4
          %s132 = int_to_ptr.hbm [resolvable:$true] %s131
          %s133 = sshll.u32 %s124, 4
          %s134 = int_to_ptr.vmem [resolvable:$true] %s133
          %136 = dma.hbm_to_vmem [thread:$0]  %s132, 128, %s134, %s121
        $region24: #{tpu_custom_call.1} parent=19 // pred_fallthru
          _
      $region20: #{tpu_custom_call.1} parent=5 // pred_fallthru
        _
      %p137 = scmp.le.s32.totalorder 1, %s15
      %p138 = scmp.lt.s32.totalorder %s15, 3
      %p139 = pnand %p137, %p138
      %p140 = pneg %p139
      // Predicated region
      $region25: #{tpu_custom_call.1} parent=5 // pred_check
        _
      $region26: #{tpu_custom_call.1} parent=5 // pred_check_branch
        %142 = sbr.rel (%p139) target = $region28
      $region27: #{tpu_custom_call.1} parent=5 // pred_region
        %s143 = ssub.s32 %s15, 1
        // Predicated region
        $region29: #{tpu_custom_call.1} parent=27 // pred_check
          %p144 = pneg %p36
        $region30: #{tpu_custom_call.1} parent=27 // pred_check_branch
          %146 = sbr.rel (%p144) target = $region32
        $region31: #{tpu_custom_call.1} parent=27 // pred_region
          %148 = dma.done [#allocation5], 16
        $region32: #{tpu_custom_call.1} parent=27 // pred_fallthru
          _
        %s149 = sand.u32 %s49, 1
        %s150 = scalar_lea.sflag [#allocation3], %s149
        %s151 = sand.u32 %s49, 1
        %s152 = smul.addr %s151, 8
        %s153 = scalar_lea.vmem [#allocation6], %s152
        // Predicated region
        $region33: #{tpu_custom_call.1} parent=27 // pred_check
          %p154 = pneg %p62
        $region34: #{tpu_custom_call.1} parent=27 // pred_check_branch
          %156 = sbr.rel (%p154) target = $region36
        $region35: #{tpu_custom_call.1} parent=27 // pred_region
          %158 = dma.done %s150, 128
        $region36: #{tpu_custom_call.1} parent=27 // pred_fallthru
          _
        %159 = sfence
        %p160 = pneg %p36
        %p161 = pneg %p33
        %s162 = sand.u32 %s49, 1
        %s163 = scalar_lea.sflag [#allocation3], %s162
        %s164 = sand.u32 %s49, 1
        %s165 = smul.addr %s164, 8
        %s166 = scalar_lea.vmem [#allocation6], %s165
        %p167 = pneg %p62
        %p168 = pneg %p59
        %p169 = pneg %p88
        %p170 = pneg %p85
        %s171 = sand.u32 %s75, 1
        %s172 = scalar_lea.sflag [#allocation4], %s171
        %s173 = sand.u32 %s75, 1
        %s174 = smul.addr %s173, 4
        %s175 = scalar_lea.vmem [#allocation7], %s174
        %s176 = smul.u32 4, %s20
        %s177 = smul.u32 4, %s20
        %v178 = vld [vmem:[%s153] sm:$0xff]
        %s179 = sld [smem:[#allocation2]]
        %s180 = sld [smem:[#allocation2 + $0x1]]
        %s181 = sld [smem:[#allocation2 + $0x2]]
        %s182 = sld [smem:[#allocation2 + $0x3]]
        %s183 = sld [smem:[#allocation2 + $0x4]]
        %s184 = sld [smem:[#allocation2 + $0x5]]
        %s185 = sld [smem:[#allocation2 + $0x6]]
        %s186 = sld [smem:[#allocation2 + $0x7]]
        %s187 = sld [smem:[#allocation2 + $0x8]]
        %v188 = vstv %s179
        %v189 = vmul.f32 %v178, %v188
        %v190 = vstv %s181
        %v191 = vmul.f32 %v178, %v190
        %v193 = vrot.slane %v191, 7
        %v194 = vrot.slane %v193, 2
        %v196 = vadd.f32 %v189, %v194
        %v197 = vstv %s183
        %v198 = vadd.f32 %v196, %v197
        %v199 = vstv %s180
        %v200 = vmul.f32 %v178, %v199
        %v201 = vstv %s182
        %v202 = vmul.f32 %v178, %v201
        %v204 = vrot.slane %v202, 7
        %v205 = vrot.slane %v204, 2
        %v207 = vadd.f32 %v200, %v205
        %v208 = vstv %s184
        %v209 = vadd.f32 %v207, %v208
        %v210 = vsub.f32 0.0, %v198
        %v211 = vmul.f32 %v210, 1.442695
        %v212 = vpow.pop %v211
        %v213 = vadd.f32 %v212, 1.0
        %v214 = vrcp.pop %v213
        %v215 = vsub.f32 0.0, %v209
        %v216 = vmul.f32 %v215, 1.442695
        %v217 = vpow.pop %v216
        %v218 = vadd.f32 %v217, 1.0
        %v219 = vrcp.pop %v218
        %v220 = vstv %s185
        %v221 = vmul.f32 %v214, %v220
        %v222 = vstv %s186
        %v223 = vmul.f32 %v219, %v222
        %v224 = vadd.f32 %v221, %v223
        %v225 = vstv %s187
        %v226 = vadd.f32 %v224, %v225
        %v227 = vsub.f32 0.0, %v226
        %v228 = vmul.f32 %v227, 1.442695
        %v229 = vpow.pop %v228
        %v230 = vadd.f32 %v229, 1.0
        %v231 = vrcp.pop %v230
        %v233 = vrot.slane %v231, 1
        %v234 = vrot.slane %v231, 2
        %v235 = vrot.slane %v231, 3
        %vm236 = vcmask 1040384
        %v237 = vsel %vm236, %v231, %v233
        %vm238 = vcmask 1042434
        %v239 = vsel %vm238, %v234, %v235
        %vm240 = vcmask 1041408
        %v241 = vsel %vm240, %v237, %v239
        %v243 = vlaneseq
        %vm244 = vcmp.ge.s32.totalorder %v243, 0
        %vm245 = vcmp.lt.s32.totalorder %v243, 512
        %vm246 = vmand %vm244, %vm245
        %247 = vst.msk [vmem:[%s175] sm:$0xf] %vm246, %v241
        %s248 = sand.u32 %s75, 1
        %s249 = scalar_lea.sflag [#allocation4], %s248
        %s250 = sand.u32 %s75, 1
        %s251 = smul.addr %s250, 4
        %s252 = scalar_lea.vmem [#allocation7], %s251
        // Predicated region
        $region37: #{tpu_custom_call.1} parent=27 // pred_check
          %p253 = pneg %p85
        $region38: #{tpu_custom_call.1} parent=27 // pred_check_branch
          %255 = sbr.rel (%p253) target = $region40
        $region39: #{tpu_custom_call.1} parent=27 // pred_region
          %s256 = smul.u32 4, %s20
          %258 = vsyncadd %s249, 0
          %s259 = scalar_lea.hbm %s2, %s256
          %s261 = sshll.u32 %s252, 4
          %s262 = int_to_ptr.vmem [resolvable:$true] %s261
          %s263 = sshll.u32 %s259, 4
          %s264 = int_to_ptr.hbm [resolvable:$true] %s263
          %266 = dma.vmem_to_hbm [thread:$0]  %s262, 64, %s264, %s249
        $region40: #{tpu_custom_call.1} parent=27 // pred_fallthru
          _
      $region28: #{tpu_custom_call.1} parent=5 // pred_fallthru
        _
      %p267 = scmp.le.s32.totalorder 2, %s15
      // Predicated region
      $region41: #{tpu_custom_call.1} parent=5 // pred_check
        %p268 = pneg %p267
      $region42: #{tpu_custom_call.1} parent=5 // pred_check_branch
        %270 = sbr.rel (%p268) target = $region44
      $region43: #{tpu_custom_call.1} parent=5 // pred_region
        %s271 = ssub.s32 %s15, 2
        // Predicated region
        $region45: #{tpu_custom_call.1} parent=43 // pred_check
          %p272 = pneg %p91
        $region46: #{tpu_custom_call.1} parent=43 // pred_check_branch
          %274 = sbr.rel (%p272) target = $region48
        $region47: #{tpu_custom_call.1} parent=43 // pred_region
          %s275 = sand.u32 %s76, 1
          %s276 = scalar_lea.sflag [#allocation4], %s275
          %s277 = sand.u32 %s76, 1
          %s278 = smul.addr %s277, 4
          %s279 = scalar_lea.vmem [#allocation7], %s278
          %281 = dma.done %s276, 64
        $region48: #{tpu_custom_call.1} parent=43 // pred_fallthru
          _
      $region44: #{tpu_custom_call.1} parent=5 // pred_fallthru
        _
    $region6: #{tpu_custom_call.1} parent=1 // loop_footer
      %s19 = sadd.s32 1, %s15
    $region7: #{tpu_custom_call.1} parent=1 // loop_footer_branch
      %14 = sbr.rel target = $region3
    $region8: #{tpu_custom_call.1} parent=1 // loop_exit
      _
    %282 = vsyncpa [#allocation3], 1
    %s283 = scalar_lea.sflag [#allocation3], 1
    %284 = vsyncpa %s283, 1
    %285 = vsyncpa [#allocation4], 1
    %s286 = scalar_lea.sflag [#allocation4], 1
    %287 = vsyncpa %s286, 1
    %288 = vsyncpa [#allocation5], 1
    %s289 = scalar_lea.sflag [#allocation5], 1
    %290 = vsyncpa %s289, 1

</llo_original>
